<compile_context>
chip_gen: v5e
topology: v5e:2x2
jax: 0.10.0
libtpu: 0.0.40
codegen_flags: <defaults>
</compile_context>

<pallas_src>
import jax
import jax.numpy as jnp
from jax.experimental import pallas as pl
from jax.experimental.pallas import tpu as pltpu

IN_CH = 224
OUT_CH = 4


def _conv1x1_kernel(x_ref, w_ref, b_ref, o_ref):
    # x_ref: (1, IN_CH, TSP)  -- channels in sublanes, spatial in lanes
    # w_ref: (OUT_CH, IN_CH)
    # b_ref: (OUT_CH, 1)
    # o_ref: (1, OUT_CH, TSP) -- lane-dense output (last dim = spatial tile)
    x = x_ref[0]  # (IN_CH, TSP)
    acc = jax.lax.dot_general(
        w_ref[...], x,
        dimension_numbers=(((1,), (0,)), ((), ())),
        preferred_element_type=jnp.float32,
    )  # (OUT_CH, TSP), f32 accumulate on the MXU
    o_ref[0] = (acc + b_ref[...]).astype(o_ref.dtype)


def _choose_spatial_tile(dhw, tsp):
    """Pick a 128-lane-aligned spatial tile <= tsp with balanced blocks."""
    if dhw <= tsp:
        return dhw  # single block: full extent is always legal
    assert tsp % 128 == 0, "spatial tile must be a multiple of 128 lanes"
    nblk = -(-dhw // tsp)              # ceil(dhw / tsp)
    bal = -(-dhw // nblk)              # ceil(dhw / nblk): balanced block size
    return ((bal + 127) // 128) * 128  # round up to lane multiple (<= tsp)


def decoder_forward(x_ncdhw, weight, bias, *, tsp=8192):
    """x_ncdhw: [N, 224, D, H, W]; weight: [4, 224, 1, 1, 1]; bias: [4]."""
    n, c, d, h, w = x_ncdhw.shape
    assert c == IN_CH
    dhw = d * h * w

    # Free reshape: NCDHW -> (N, C, DHW). No transpose, no pad.
    x3 = x_ncdhw.reshape(n, IN_CH, dhw)
    w_mat = weight.reshape(OUT_CH, IN_CH)   # (4, 224), lane-dim 224
    b_mat = bias.reshape(OUT_CH, 1)         # broadcasts over spatial lanes

    tsp_eff = _choose_spatial_tile(dhw, tsp)
    grid = (n, pl.cdiv(dhw, tsp_eff))

    out3 = pl.pallas_call(
        _conv1x1_kernel,
        out_shape=jax.ShapeDtypeStruct((n, OUT_CH, dhw), x_ncdhw.dtype),
        grid_spec=pltpu.PrefetchScalarGridSpec(
            num_scalar_prefetch=0,
            grid=grid,
            in_specs=[
                pl.BlockSpec((1, IN_CH, tsp_eff), lambda i, j: (i, 0, j)),
                pl.BlockSpec((OUT_CH, IN_CH), lambda i, j: (0, 0)),
                pl.BlockSpec((OUT_CH, 1), lambda i, j: (0, 0)),
            ],
            out_specs=pl.BlockSpec((1, OUT_CH, tsp_eff), lambda i, j: (i, 0, j)),
        ),
        compiler_params=pltpu.CompilerParams(
            dimension_semantics=("parallel", "parallel"),
            vmem_limit_bytes=32 * 1024 * 1024,
        ),
    )(x3, w_mat, b_mat)

    # Free reshape back: (N, 4, DHW) -> NCDHW output.
    return out3.reshape(n, OUT_CH, d, h, w)


def init_decoder_params(key):
    """Deterministic init matching Conv3d(224, 4, kernel_size=(1,1,1)) shapes."""
    k_w, k_b = jax.random.split(key)
    fan_in = IN_CH * 1 * 1 * 1
    bound = 1.0 / jnp.sqrt(fan_in)
    weight = jax.random.uniform(
        k_w, (OUT_CH, IN_CH, 1, 1, 1), jnp.float32, -bound, bound
    )
    bias = jax.random.uniform(k_b, (OUT_CH,), jnp.float32, -bound, bound)
    return weight, bias


def _reference(x, weight, bias):
    return jnp.einsum(
        "ncdhw,oc->nodhw", x, weight.reshape(OUT_CH, IN_CH)
    ) + bias.reshape(1, OUT_CH, 1, 1, 1)


if __name__ == "__main__":
    key = jax.random.PRNGKey(0)
    k_x, k_x2, k_p = jax.random.split(key, 3)
    weight, bias = init_decoder_params(k_p)

    # 1) Small shape consistent with the module: N=2, C=224 (fixed), D=H=W=4.
    N, D, H, W = 2, 4, 4, 4
    x = jax.random.normal(k_x, (N, IN_CH, D, H, W), jnp.float32)
    out = jax.block_until_ready(decoder_forward(x, weight, bias))
    ref = _reference(x, weight, bias)
    assert out.shape == (N, OUT_CH, D, H, W)
    assert jnp.allclose(out, ref, atol=1e-4, rtol=1e-4)

    # 2) Exercise the multi-block path with a non-divisible spatial extent
    #    (DHW = 320, tsp = 128 -> balanced 128-lane blocks, clipped tail).
    D2, H2, W2 = 8, 8, 5
    x2 = jax.random.normal(k_x2, (N, IN_CH, D2, H2, W2), jnp.float32)
    out2 = jax.block_until_ready(decoder_forward(x2, weight, bias, tsp=128))
    ref2 = _reference(x2, weight, bias)
    assert out2.shape == (N, OUT_CH, D2, H2, W2)
    assert jnp.allclose(out2, ref2, atol=1e-4, rtol=1e-4)

    print("KERNEL_OK")
</pallas_src>

<mosaic_0001>
module attributes {stable_mosaic.version = 11 : i64} {
  func.func @_conv1x1_kernel(%arg0: i32, %arg1: i32, %arg2: memref<1x224x64xf32, #tpu.memory_space<vmem>>, %arg3: memref<4x224xf32, #tpu.memory_space<vmem>>, %arg4: memref<4x1xf32, #tpu.memory_space<vmem>>, %arg5: memref<1x4x64xf32, #tpu.memory_space<vmem>>) attributes {dimension_semantics = [#tpu.dimension_semantics<parallel>, #tpu.dimension_semantics<parallel>], iteration_bounds = array<i64: 2, 1>, scalar_prefetch = 0 : i64, scratch_operands = 0 : i64, tpu.core_type = #tpu.core_type<tc>, window_params = [{transform_indices = @transform_0, window_bounds = array<i64: 1, 224, 64>}, {pipeline_mode = #tpu.pipeline_mode<synchronous>, transform_indices = @transform_1, window_bounds = array<i64: 4, 224>}, {pipeline_mode = #tpu.pipeline_mode<synchronous>, transform_indices = @transform_2, window_bounds = array<i64: 4, 1>}, {transform_indices = @transform_3, window_bounds = array<i64: 1, 4, 64>}]} {
    %c0 = arith.constant 0 : index
    %c0_0 = arith.constant 0 : index
    %c0_1 = arith.constant 0 : index
    %0 = vector.load %arg2[%c0, %c0_0, %c0_1] : memref<1x224x64xf32, #tpu.memory_space<vmem>>, vector<1x224x64xf32>
    %1 = vector.shape_cast %0 : vector<1x224x64xf32> to vector<224x64xf32>
    %c0_2 = arith.constant 0 : index
    %c0_3 = arith.constant 0 : index
    %2 = vector.load %arg3[%c0_2, %c0_3] : memref<4x224xf32, #tpu.memory_space<vmem>>, vector<4x224xf32>
    %cst = arith.constant dense<0.000000e+00> : vector<4x64xf32>
    %3 = tpu.matmul %2, %1, %cst {dimension_numbers = #tpu.dot_dimension_numbers<[1], [0], [0], [1], [0, 0, 1, 1], [], []>} : vector<4x224xf32>, vector<224x64xf32>, vector<4x64xf32> -> vector<4x64xf32>
    %c0_4 = arith.constant 0 : index
    %c0_5 = arith.constant 0 : index
    %4 = vector.load %arg4[%c0_4, %c0_5] : memref<4x1xf32, #tpu.memory_space<vmem>>, vector<4x1xf32>
    %5 = vector.broadcast %4 : vector<4x1xf32> to vector<4x64xf32>
    %6 = arith.addf %3, %5 : vector<4x64xf32>
    %c0_6 = arith.constant 0 : index
    %c0_7 = arith.constant 0 : index
    %c0_8 = arith.constant 0 : index
    %7 = vector.load %arg5[%c0_6, %c0_7, %c0_8] : memref<1x4x64xf32, #tpu.memory_space<vmem>>, vector<1x4x64xf32>
    %8 = vector.shape_cast %7 : vector<1x4x64xf32> to vector<4x64xf32>
    %9 = vector.shape_cast %6 : vector<4x64xf32> to vector<1x4x64xf32>
    tpu.vector_store %arg5[%c0_6, %c0_7, %c0_8], %9 {strides = array<i32>} : memref<1x4x64xf32, #tpu.memory_space<vmem>>, vector<1x4x64xf32>,
    return
  }
  func.func @transform_0(%arg0: i32, %arg1: i32) -> (i32, i32, i32) {
    %c0_i32 = arith.constant 0 : i32
    %c0_i32_0 = arith.constant 0 : i32
    return %arg0, %c0_i32, %arg1 : i32, i32, i32
  }
  func.func @transform_1(%arg0: i32, %arg1: i32) -> (i32, i32) {
    %c0_i32 = arith.constant 0 : i32
    %c0_i32_0 = arith.constant 0 : i32
    %c0_i32_1 = arith.constant 0 : i32
    return %c0_i32, %c0_i32_0 : i32, i32
  }
  func.func @transform_2(%arg0: i32, %arg1: i32) -> (i32, i32) {
    %c0_i32 = arith.constant 0 : i32
    %c0_i32_0 = arith.constant 0 : i32
    %c0_i32_1 = arith.constant 0 : i32
    return %c0_i32, %c0_i32_0 : i32, i32
  }
  func.func @transform_3(%arg0: i32, %arg1: i32) -> (i32, i32, i32) {
    %c0_i32 = arith.constant 0 : i32
    %c0_i32_0 = arith.constant 0 : i32
    return %arg0, %c0_i32, %arg1 : i32, i32, i32
  }
}

</mosaic_0001>

<llo_original>
// kernel: tpu_custom_call.1
$region0: #{tpu_custom_call.1}
  #allocation0 [shape = 'u32[]', space=smem, size = 0x4, offset = 0x4, fixed_abs, tag = 'smem constant byte address 0x4 - core index']
  #allocation1 [shape = 'u32[72,128]{1,0:T(1,128)}', space=vmem, size = 0x9000, scoped, tag = 'internal scratch']
  %s0 = inlined_call_operand.vmem [shape: f32[2,224,64], index: 0, kind: input, shape index: {}]
  %s1 = inlined_call_operand.vmem [shape: f32[4,224], index: 1, kind: input, shape index: {}]
  %s2 = inlined_call_operand.vmem [shape: f32[4,1], index: 2, kind: input, shape index: {}]
  %s3 = inlined_call_operand.hbm [shape: f32[2,4,64], index: 3, kind: output, shape index: {}]
  %s4 = sld [smem:[#allocation0]]
  $region45: #{tpu_custom_call.1} parent=0
    _
  %s6 = ssub.s32 1, %s4
  %s7 = scalar_select 0, %s6, %s4
  $region1: #{tpu_custom_call.1} parent=0
    #allocation2 [shape = 'u8[4096]{0}', space=vmem, size = 0x1000, scoped, tag = 'output window, operand 0']
    #allocation3 [shape = 's32[2]{0}', space=sflag, size = 0x8, scoped, tag = 'scoped memory for tpu_custom_call.1']
    %8 = vsyncpa [#allocation3], 0
    %s9 = scalar_lea.sflag [#allocation3], 1
    %10 = vsyncpa %s9, 0
    loop: start=0, step=1, limit=4
    $region2: #{tpu_custom_call.1} parent=1 // loop_pre_header
      _
    $region3: #{tpu_custom_call.1} parent=1 // loop_header
      %s12 = sphi 0, %s16
      %p13 = scmp.ge.s32.totalorder %s12, 4
      %s19 = sphi 0, %s31
      %s20 = sphi 0, %s27
      %s21 = sphi 0, %s19
      %s22 = sphi 0, %s20
      %s23 = sphi 0, %s21
      %s24 = sphi 0, %s22
      %s36 = sphi 0, %s38
      %s39 = sphi 0, %s36
      %s40 = sphi 0, %s39
      %s56 = sphi 0, %s40
      %s60 = sphi 0, %s60
      %s62 = sphi 0, %s60
      %s63 = sphi 0, %s62
      %s77 = sphi 0, %s63
      %s81 = sphi 0, %s81
      %s83 = sphi 0, %s81
      %s84 = sphi 0, %s83
      %s98 = sphi 0, %s84
      %s106 = sphi 0, %s108
      %s109 = sphi 0, %s106
      %s110 = sphi 0, %s109
      %s126 = sphi 0, %s110
    $region4: #{tpu_custom_call.1} parent=1 // loop_header_branch
      %15 = sbr.rel (%p13) target = $region8
    $region5: #{tpu_custom_call.1} parent=1 // loop_body
      %s17 = ssub.s32 %s12, 1
      %s18 = ssub.s32 %s12, 2
      %s25 = sadd.s32 1, %s20
      %p26 = scmp.ge.s32.totalorder %s25, 1
      %s27 = scalar_select %p26, 0, %s25
      %s28 = sadd.s32 1, %s19
      %s29 = scalar_select %p26, %s28, %s19
      %p30 = scmp.ge.s32.totalorder %s29, 2
      %s31 = scalar_select %p30, 0, %s29
      %s32 = ssub.s32 %s19, %s31
      %s33 = ssub.s32 %s20, %s27
      %s34 = sor.u32 %s32, %s33
      %p35 = scmp.eq.s32.totalorder %s34, 0
      %s37 = sadd.s32 %s36, 1
      %s38 = scalar_select %p35, %s36, %s37
      %p41 = pneg %p35
      %p42 = scmp.eq.s32.totalorder %s12, 1
      %p43 = por %p41, %p42
      %p44 = scmp.ne.s32.totalorder %s36, %s39
      %p45 = scmp.eq.s32.totalorder %s12, 0
      %p46 = por %p44, %p45
      %p47 = scmp.ne.s32.totalorder %s36, %s39
      %p48 = scmp.eq.s32.totalorder %s17, 1
      %p49 = por %p47, %p48
      %p50 = scmp.ne.s32.totalorder %s39, %s40
      %p51 = scmp.eq.s32.totalorder %s17, 0
      %p52 = por %p50, %p51
      %p53 = scmp.ne.s32.totalorder %s39, %s40
      %p54 = scmp.eq.s32.totalorder %s18, 1
      %p55 = por %p53, %p54
      %p57 = scmp.ne.s32.totalorder %s40, %s56
      %p58 = scmp.eq.s32.totalorder %s18, 0
      %p59 = por %p57, %p58
      %s61 = sadd.s32 %s60, 1
      %p64 = scmp.eq.s32.totalorder %s12, 1
      %p65 = scmp.ne.s32.totalorder %s60, %s62
      %p66 = scmp.eq.s32.totalorder %s12, 0
      %p67 = por %p65, %p66
      %p68 = scmp.ne.s32.totalorder %s60, %s62
      %p69 = scmp.eq.s32.totalorder %s17, 1
      %p70 = por %p68, %p69
      %p71 = scmp.ne.s32.totalorder %s62, %s63
      %p72 = scmp.eq.s32.totalorder %s17, 0
      %p73 = por %p71, %p72
      %p74 = scmp.ne.s32.totalorder %s62, %s63
      %p75 = scmp.eq.s32.totalorder %s18, 1
      %p76 = por %p74, %p75
      %p78 = scmp.ne.s32.totalorder %s63, %s77
      %p79 = scmp.eq.s32.totalorder %s18, 0
      %p80 = por %p78, %p79
      %s82 = sadd.s32 %s81, 1
      %p85 = scmp.eq.s32.totalorder %s12, 1
      %p86 = scmp.ne.s32.totalorder %s81, %s83
      %p87 = scmp.eq.s32.totalorder %s12, 0
      %p88 = por %p86, %p87
      %p89 = scmp.ne.s32.totalorder %s81, %s83
      %p90 = scmp.eq.s32.totalorder %s17, 1
      %p91 = por %p89, %p90
      %p92 = scmp.ne.s32.totalorder %s83, %s84
      %p93 = scmp.eq.s32.totalorder %s17, 0
      %p94 = por %p92, %p93
      %p95 = scmp.ne.s32.totalorder %s83, %s84
      %p96 = scmp.eq.s32.totalorder %s18, 1
      %p97 = por %p95, %p96
      %p99 = scmp.ne.s32.totalorder %s84, %s98
      %p100 = scmp.eq.s32.totalorder %s18, 0
      %p101 = por %p99, %p100
      %s102 = ssub.s32 %s19, %s31
      %s103 = ssub.s32 %s20, %s27
      %s104 = sor.u32 %s102, %s103
      %p105 = scmp.eq.s32.totalorder %s104, 0
      %s107 = sadd.s32 %s106, 1
      %s108 = scalar_select %p105, %s106, %s107
      %p111 = pneg %p105
      %p112 = scmp.eq.s32.totalorder %s12, 1
      %p113 = por %p111, %p112
      %p114 = scmp.ne.s32.totalorder %s106, %s109
      %p115 = scmp.eq.s32.totalorder %s12, 0
      %p116 = por %p114, %p115
      %p117 = scmp.ne.s32.totalorder %s106, %s109
      %p118 = scmp.eq.s32.totalorder %s17, 1
      %p119 = por %p117, %p118
      %p120 = scmp.ne.s32.totalorder %s109, %s110
      %p121 = scmp.eq.s32.totalorder %s17, 0
      %p122 = por %p120, %p121
      %p123 = scmp.ne.s32.totalorder %s109, %s110
      %p124 = scmp.eq.s32.totalorder %s18, 1
      %p125 = por %p123, %p124
      %p127 = scmp.ne.s32.totalorder %s110, %s126
      %p128 = scmp.eq.s32.totalorder %s18, 0
      %p129 = por %p127, %p128
      %p130 = scmp.le.s32.totalorder 1, %s12
      %p131 = scmp.lt.s32.totalorder %s12, 3
      %p132 = pnand %p130, %p131
      %p133 = pneg %p132
      // Predicated region
      $region9: #{tpu_custom_call.1} parent=5 // pred_check
        _
      $region10: #{tpu_custom_call.1} parent=5 // pred_check_branch
        %135 = sbr.rel (%p132) target = $region12
      $region11: #{tpu_custom_call.1} parent=5 // pred_region
        %s136 = ssub.s32 %s12, 1
        // Predicated region
        $region13: #{tpu_custom_call.1} parent=11 // pred_check
          %p137 = pneg %p73
        $region14: #{tpu_custom_call.1} parent=11 // pred_check_branch
          %139 = sbr.rel (%p137) target = $region16
        $region15: #{tpu_custom_call.1} parent=11 // pred_region
          _
        $region16: #{tpu_custom_call.1} parent=11 // pred_fallthru
          _
        // Predicated region
        $region17: #{tpu_custom_call.1} parent=11 // pred_check
          %p140 = pneg %p94
        $region18: #{tpu_custom_call.1} parent=11 // pred_check_branch
          %142 = sbr.rel (%p140) target = $region20
        $region19: #{tpu_custom_call.1} parent=11 // pred_region
          _
        $region20: #{tpu_custom_call.1} parent=11 // pred_fallthru
          _
      $region12: #{tpu_custom_call.1} parent=5 // pred_fallthru
        _
      %p143 = scmp.lt.s32.totalorder %s12, 2
      // Predicated region
      $region21: #{tpu_custom_call.1} parent=5 // pred_check
        %p144 = pneg %p143
      $region22: #{tpu_custom_call.1} parent=5 // pred_check_branch
        %146 = sbr.rel (%p144) target = $region24
      $region23: #{tpu_custom_call.1} parent=5 // pred_region
        // Predicated region
        $region25: #{tpu_custom_call.1} parent=23 // pred_check
          %p147 = pneg %p46
        $region26: #{tpu_custom_call.1} parent=23 // pred_check_branch
          %149 = sbr.rel (%p147) target = $region28
        $region27: #{tpu_custom_call.1} parent=23 // pred_region
          %p150 = scmp.lt.s32.totalorder %s19, 1
          %s151 = scalar_select %p150, %s19, 1
          %p152 = scmp.lt.s32.totalorder %s20, 0
          %s153 = scalar_select %p152, %s20, 0
          %s154 = smul.addr %s151, 28
          %s155 = sadd.s32 %s153, %s154
          %s156 = smul.addr %s155, 8
          %s157 = scalar_lea.vmem %s0, %s156
        $region28: #{tpu_custom_call.1} parent=23 // pred_fallthru
          _
      $region24: #{tpu_custom_call.1} parent=5 // pred_fallthru
        _
      %p158 = scmp.le.s32.totalorder 1, %s12
      %p159 = scmp.lt.s32.totalorder %s12, 3
      %p160 = pnand %p158, %p159
      %p161 = pneg %p160
      // Predicated region
      $region29: #{tpu_custom_call.1} parent=5 // pred_check
        _
      $region30: #{tpu_custom_call.1} parent=5 // pred_check_branch
        %163 = sbr.rel (%p160) target = $region32
      $region31: #{tpu_custom_call.1} parent=5 // pred_region
        %s164 = ssub.s32 %s12, 1
        %p165 = scmp.lt.s32.totalorder %s21, 1
        %s166 = scalar_select %p165, %s21, 1
        %p167 = scmp.lt.s32.totalorder %s22, 0
        %s168 = scalar_select %p167, %s22, 0
        %s169 = smul.addr %s166, 28
        %s170 = sadd.s32 %s168, %s169
        %s171 = smul.addr %s170, 8
        %s172 = scalar_lea.vmem %s0, %s171
        %p173 = pneg %p52
        %p174 = pneg %p49
        %p175 = pneg %p73
        %p176 = pneg %p70
        %p177 = pneg %p94
        %p178 = pneg %p91
        %p179 = pneg %p122
        %p180 = pneg %p119
        %s181 = sand.u32 %s109, 1
        %s182 = scalar_lea.sflag [#allocation3], %s181
        %s183 = sand.u32 %s109, 1
        %s184 = smul.addr %s183, 4
        %s185 = scalar_lea.vmem [#allocation2], %s184
        %p186 = scmp.lt.s32.totalorder %s21, 1
        %s187 = scalar_select %p186, %s21, 1
        %p188 = scmp.lt.s32.totalorder %s22, 0
        %s189 = scalar_select %p188, %s22, 0
        %s190 = smul.addr %s187, 28
        %s191 = sadd.s32 %s189, %s190
        %s192 = smul.addr %s191, 8
        %s193 = scalar_lea.vmem %s0, %s192
        %v194 = vld [vmem:[%s193] sm:$0xff]
        %v195 = vld [vmem:[%s193 + $0x8] sm:$0xff]
        %v196 = vld [vmem:[%s193 + $0x10] sm:$0xff]
        %v197 = vld [vmem:[%s193 + $0x18] sm:$0xff]
        %v198 = vld [vmem:[%s193 + $0x20] sm:$0xff]
        %v199 = vld [vmem:[%s193 + $0x28] sm:$0xff]
        %v200 = vld [vmem:[%s193 + $0x30] sm:$0xff]
        %v201 = vld [vmem:[%s193 + $0x38] sm:$0xff]
        %v202 = vld [vmem:[%s193 + $0x40] sm:$0xff]
        %v203 = vld [vmem:[%s193 + $0x48] sm:$0xff]
        %v204 = vld [vmem:[%s193 + $0x50] sm:$0xff]
        %v205 = vld [vmem:[%s193 + $0x58] sm:$0xff]
        %v206 = vld [vmem:[%s193 + $0x60] sm:$0xff]
        %v207 = vld [vmem:[%s193 + $0x68] sm:$0xff]
        %v208 = vld [vmem:[%s193 + $0x70] sm:$0xff]
        %v209 = vld [vmem:[%s193 + $0x78] sm:$0xff]
        %v210 = vld [vmem:[%s193 + $0x80] sm:$0xff]
        %v211 = vld [vmem:[%s193 + $0x88] sm:$0xff]
        %v212 = vld [vmem:[%s193 + $0x90] sm:$0xff]
        %v213 = vld [vmem:[%s193 + $0x98] sm:$0xff]
        %v214 = vld [vmem:[%s193 + $0xa0] sm:$0xff]
        %v215 = vld [vmem:[%s193 + $0xa8] sm:$0xff]
        %v216 = vld [vmem:[%s193 + $0xb0] sm:$0xff]
        %v217 = vld [vmem:[%s193 + $0xb8] sm:$0xff]
        %v218 = vld [vmem:[%s193 + $0xc0] sm:$0xff]
        %v219 = vld [vmem:[%s193 + $0xc8] sm:$0xff]
        %v220 = vld [vmem:[%s193 + $0xd0] sm:$0xff]
        %v221 = vld [vmem:[%s193 + $0xd8] sm:$0xff]
        %v222 = vld [vmem:[%s1] sm:$0xff]
        %v223 = vld [vmem:[%s2] sm:$0xf]
        %225 = vset.pattern.permute.xlu0 0
        %226 = vperm.xlu0 %225, %v223
        %v227 = vpop.permute.xlu0 %226
        %230 = vst [vmem:[#allocation1] ss:$2 sm:$0xff] %v222
        %v231 = vld.sshfl [vmem:[#allocation1] sm:$0xff pattern:$0x75316420]
        %v232 = vld.sshfl [vmem:[#allocation1 + $0x8] sm:$0xff pattern:$0x75316420]
        %vm234 = vcmask 785408
        %v235 = vsel %vm234, %v232, 0
        %237 = vmatpush.msra.mxu0 %v209
        %238 = vmatpush.msra.mxu0 %v208
        %239 = vmatpush.msra.mxu0 %v207
        %240 = vmatpush.msra.mxu0 %v206
        %241 = vmatpush.msra.mxu0 %v205
        %242 = vmatpush.msra.mxu0 %v204
        %243 = vmatpush.msra.mxu0 %v203
        %244 = vmatpush.msra.mxu0 %v202
        %245 = vmatpush.msra.mxu0 %v201
        %246 = vmatpush.msra.mxu0 %v200
        %247 = vmatpush.msra.mxu0 %v199
        %248 = vmatpush.msra.mxu0 %v198
        %249 = vmatpush.msra.mxu0 %v197
        %250 = vmatpush.msra.mxu0 %v196
        %251 = vmatpush.msra.mxu0 %v195
        %252 = vmatpush.msra.mxu0 %v194
        %253 = vmatmul.f32.gmra.mxu0 %v231
        %v254 = vpop.f32.mrf.mxu0
        %v255 = vadd.f32 %v227, %v254
        %256 = vdwg.mxu0
        %257 = vmatpush.msra.mxu0 0.0
        %258 = vmatpush.msra.mxu0 0.0
        %259 = vmatpush.msra.mxu0 0.0
        %260 = vmatpush.msra.mxu0 0.0
        %261 = vmatpush.msra.mxu0 %v221
        %262 = vmatpush.msra.mxu0 %v220
        %263 = vmatpush.msra.mxu0 %v219
        %264 = vmatpush.msra.mxu0 %v218
        %265 = vmatpush.msra.mxu0 %v217
        %266 = vmatpush.msra.mxu0 %v216
        %267 = vmatpush.msra.mxu0 %v215
        %268 = vmatpush.msra.mxu0 %v214
        %269 = vmatpush.msra.mxu0 %v213
        %270 = vmatpush.msra.mxu0 %v212
        %271 = vmatpush.msra.mxu0 %v211
        %272 = vmatpush.msra.mxu0 %v210
        %273 = vmatmul.f32.gmra.mxu0 %v235
        %v274 = vpop.f32.mrf.mxu0
        %v275 = vadd.f32 %v255, %v274
        %276 = vdwg.mxu0
        %vm277 = vcmask 519168
        %278 = vst.msk [vmem:[%s185] sm:$0xf] %vm277, %v275
        %s279 = sand.u32 %s109, 1
        %s280 = scalar_lea.sflag [#allocation3], %s279
        %s281 = sand.u32 %s109, 1
        %s282 = smul.addr %s281, 4
        %s283 = scalar_lea.vmem [#allocation2], %s282
        // Predicated region
        $region33: #{tpu_custom_call.1} parent=31 // pred_check
          %p284 = pneg %p119
        $region34: #{tpu_custom_call.1} parent=31 // pred_check_branch
          %286 = sbr.rel (%p284) target = $region36
        $region35: #{tpu_custom_call.1} parent=31 // pred_region
          %288 = vsyncadd %s280, 0
          %s289 = sadd.s32 %s22, %s21
          %s290 = smul.addr %s289, 4
          %s291 = scalar_lea.hbm %s3, %s290
          %s293 = sshll.u32 %s283, 4
          %s294 = int_to_ptr.vmem [resolvable:$true] %s293
          %s295 = sshll.u32 %s291, 4
          %s296 = int_to_ptr.hbm [resolvable:$true] %s295
          %298 = dma.vmem_to_hbm [thread:$0]  %s294, 64, %s296, %s280
        $region36: #{tpu_custom_call.1} parent=31 // pred_fallthru
          _
      $region32: #{tpu_custom_call.1} parent=5 // pred_fallthru
        _
      %p299 = scmp.le.s32.totalorder 2, %s12
      // Predicated region
      $region37: #{tpu_custom_call.1} parent=5 // pred_check
        %p300 = pneg %p299
      $region38: #{tpu_custom_call.1} parent=5 // pred_check_branch
        %302 = sbr.rel (%p300) target = $region40
      $region39: #{tpu_custom_call.1} parent=5 // pred_region
        %s303 = ssub.s32 %s12, 2
        // Predicated region
        $region41: #{tpu_custom_call.1} parent=39 // pred_check
          %p304 = pneg %p125
        $region42: #{tpu_custom_call.1} parent=39 // pred_check_branch
          %306 = sbr.rel (%p304) target = $region44
        $region43: #{tpu_custom_call.1} parent=39 // pred_region
          %s307 = sand.u32 %s110, 1
          %s308 = scalar_lea.sflag [#allocation3], %s307
          %s309 = sand.u32 %s110, 1
          %s310 = smul.addr %s309, 4
          %s311 = scalar_lea.vmem [#allocation2], %s310
          %313 = dma.done %s308, 64
        $region44: #{tpu_custom_call.1} parent=39 // pred_fallthru
          _
      $region40: #{tpu_custom_call.1} parent=5 // pred_fallthru
        _
    $region6: #{tpu_custom_call.1} parent=1 // loop_footer
      %s16 = sadd.s32 1, %s12
    $region7: #{tpu_custom_call.1} parent=1 // loop_footer_branch
      %11 = sbr.rel target = $region3
    $region8: #{tpu_custom_call.1} parent=1 // loop_exit
      _
    %314 = vsyncpa [#allocation3], 1
    %s315 = scalar_lea.sflag [#allocation3], 1
    %316 = vsyncpa %s315, 1

</llo_original>
